<compile_context>
chip_gen: v7x
topology: tpu7x:2x2x1
jax: 0.10.0
libtpu: 0.0.40
codegen_flags: <defaults>
</compile_context>

<pallas_src>
import functools
import math

import jax
import jax.numpy as jnp
from jax import lax
from jax.experimental import pallas as pl
from jax.experimental.pallas import tpu as pltpu


def _attn_kernel(q_ref, k_ref, v_ref, o_ref, m_sc, l_sc, acc_sc, *, scale):
    kv = pl.program_id(2)

    @pl.when(kv == 0)
    def _():
        m_sc[...] = jnp.full(m_sc.shape, -jnp.inf, dtype=m_sc.dtype)
        l_sc[...] = jnp.zeros(l_sc.shape, dtype=l_sc.dtype)
        acc_sc[...] = jnp.zeros(acc_sc.shape, dtype=acc_sc.dtype)

    q = q_ref[0].astype(jnp.float32) * jnp.float32(scale)   # (tq, d)
    k = k_ref[0].astype(jnp.float32) * jnp.float32(scale)   # (tk, d)
    v = v_ref[0].astype(jnp.float32)                        # (tk, d)

    # scores: (tq, tk) = q @ k^T (contract head channel), f32 accumulation on MXU
    s = lax.dot_general(
        q, k, (((1,), (1,)), ((), ())), preferred_element_type=jnp.float32
    )

    m_prev = m_sc[...]                                        # (tq, 1)
    m_new = jnp.maximum(m_prev, s.max(axis=-1, keepdims=True))
    alpha = jnp.exp(m_prev - m_new)
    p = jnp.exp(s - m_new)                                    # (tq, tk)

    l_sc[...] = alpha * l_sc[...] + p.sum(axis=-1, keepdims=True)
    acc_sc[...] = alpha * acc_sc[...] + jnp.dot(
        p, v, preferred_element_type=jnp.float32
    )
    m_sc[...] = m_new

    @pl.when(kv == pl.num_programs(2) - 1)
    def _():
        o_ref[0] = (acc_sc[...] / l_sc[...]).astype(o_ref.dtype)


def qkv_multihead_attention(qkv, heads, *, tile_q=None, tile_k=None):
    """qkv: (bs, n_ctx, width) with width = heads * 3 * attn_ch."""
    bs, n_ctx, width = qkv.shape
    assert width % (3 * heads) == 0, "width must be divisible by 3*heads"
    attn_ch = width // heads // 3
    scale = 1.0 / math.sqrt(math.sqrt(attn_ch))

    # ---- layout plumbing in the wrapper (not in the kernel) ----
    qkv_r = qkv.reshape(bs, n_ctx, heads, 3 * attn_ch)
    q = qkv_r[..., 0 * attn_ch:1 * attn_ch]
    k = qkv_r[..., 1 * attn_ch:2 * attn_ch]
    v = qkv_r[..., 2 * attn_ch:3 * attn_ch]

    def to_bh(x):  # (bs, n_ctx, heads, d) -> (bs*heads, n_ctx, d)
        return x.transpose(0, 2, 1, 3).reshape(bs * heads, n_ctx, attn_ch)

    q, k, v = to_bh(q), to_bh(k), to_bh(v)
    bh = bs * heads

    # ---- tile selection: large MXU-friendly tiles when possible ----
    if tile_q is None:
        tile_q = 128 if n_ctx % 128 == 0 else n_ctx
    if tile_k is None:
        tile_k = 128 if n_ctx % 128 == 0 else n_ctx
    assert n_ctx % tile_q == 0 and n_ctx % tile_k == 0

    grid = (bh, n_ctx // tile_q, n_ctx // tile_k)

    itemsize = jnp.dtype(qkv.dtype).itemsize
    cost = pl.CostEstimate(
        flops=4 * bh * n_ctx * n_ctx * attn_ch,          # QK^T + PV
        transcendentals=bh * n_ctx * n_ctx,              # exp in softmax
        bytes_accessed=4 * bh * n_ctx * attn_ch * itemsize,
    )

    kernel = functools.partial(_attn_kernel, scale=scale)

    out = pl.pallas_call(
        kernel,
        out_shape=jax.ShapeDtypeStruct((bh, n_ctx, attn_ch), qkv.dtype),
        grid_spec=pltpu.PrefetchScalarGridSpec(
            num_scalar_prefetch=0,
            grid=grid,
            in_specs=[
                pl.BlockSpec((1, tile_q, attn_ch), lambda b, qi, ki: (b, qi, 0)),
                pl.BlockSpec((1, tile_k, attn_ch), lambda b, qi, ki: (b, ki, 0)),
                pl.BlockSpec((1, tile_k, attn_ch), lambda b, qi, ki: (b, ki, 0)),
            ],
            out_specs=pl.BlockSpec(
                (1, tile_q, attn_ch), lambda b, qi, ki: (b, qi, 0)
            ),
            scratch_shapes=[
                pltpu.VMEM((tile_q, 1), jnp.float32),        # running max m
                pltpu.VMEM((tile_q, 1), jnp.float32),        # running sum l
                pltpu.VMEM((tile_q, attn_ch), jnp.float32),  # output accumulator
            ],
        ),
        compiler_params=pltpu.CompilerParams(
            dimension_semantics=("parallel", "parallel", "arbitrary"),
        ),
        cost_estimate=cost,
    )(q, k, v)

    # (bs*heads, n_ctx, d) -> (bs, n_ctx, heads*d)
    out = out.reshape(bs, heads, n_ctx, attn_ch)
    out = out.transpose(0, 2, 1, 3).reshape(bs, n_ctx, heads * attn_ch)
    return out


def qkv_attention_reference(qkv, heads):
    bs, n_ctx, width = qkv.shape
    attn_ch = width // heads // 3
    scale = 1.0 / math.sqrt(math.sqrt(attn_ch))
    qkv_r = qkv.reshape(bs, n_ctx, heads, 3 * attn_ch)
    q, k, v = jnp.split(qkv_r, 3, axis=-1)
    w = jnp.einsum("bthc,bshc->bhts", q * scale, k * scale)
    w = jax.nn.softmax(w.astype(jnp.float32), axis=-1).astype(w.dtype)
    out = jnp.einsum("bhts,bshc->bthc", w, v)
    return out.reshape(bs, n_ctx, heads * attn_ch)


if __name__ == "__main__":
    # Small deterministic test: bs=2, n_ctx=8, heads=4, attn_ch=16 -> width=192
    bs, n_ctx, heads, attn_ch = 2, 8, 4, 16
    width = heads * 3 * attn_ch

    key = jax.random.PRNGKey(0)
    qkv = jax.random.normal(key, (bs, n_ctx, width), dtype=jnp.float32)

    out = qkv_multihead_attention(qkv, heads)
    out = jax.block_until_ready(out)

    ref = qkv_attention_reference(qkv, heads)
    assert out.shape == (bs, n_ctx, heads * attn_ch)
    assert jnp.allclose(out, ref, atol=1e-4, rtol=1e-4), "mismatch vs reference"

    print("KERNEL_OK")
</pallas_src>

<mosaic_0001>
module attributes {stable_mosaic.version = 11 : i64} {
  func.func @_attn_kernel(%arg0: i32, %arg1: i32, %arg2: i32, %arg3: memref<1x8x16xf32, #tpu.memory_space<vmem>>, %arg4: memref<1x8x16xf32, #tpu.memory_space<vmem>>, %arg5: memref<1x8x16xf32, #tpu.memory_space<vmem>>, %arg6: memref<1x8x16xf32, #tpu.memory_space<vmem>>, %arg7: memref<8x1xf32, #tpu.memory_space<vmem>>, %arg8: memref<8x1xf32, #tpu.memory_space<vmem>>, %arg9: memref<8x16xf32, #tpu.memory_space<vmem>>) attributes {dimension_semantics = [#tpu.dimension_semantics<parallel>, #tpu.dimension_semantics<parallel>, #tpu.dimension_semantics<arbitrary>], iteration_bounds = array<i64: 8, 1, 1>, scalar_prefetch = 0 : i64, scratch_operands = 3 : i64, tpu.core_type = #tpu.core_type<tc>, window_params = [{transform_indices = @transform_0, window_bounds = array<i64: 1, 8, 16>}, {transform_indices = @transform_1, window_bounds = array<i64: 1, 8, 16>}, {transform_indices = @transform_2, window_bounds = array<i64: 1, 8, 16>}, {transform_indices = @transform_3, window_bounds = array<i64: 1, 8, 16>}]} {
    %c0_i32 = arith.constant 0 : i32
    %0 = arith.cmpi eq, %arg2, %c0_i32 : i32
    %1 = arith.extui %0 : i1 to i32
    %c0_i32_0 = arith.constant 0 : i32
    %2 = arith.cmpi ne, %1, %c0_i32_0 : i32
    scf.if %2 {
      %cst_28 = arith.constant 0xFF800000 : f32
      %39 = vector.broadcast %cst_28 : f32 to vector<8x1xf32>
      %c0_29 = arith.constant 0 : index
      %c0_30 = arith.constant 0 : index
      %40 = vector.load %arg7[%c0_29, %c0_30] : memref<8x1xf32, #tpu.memory_space<vmem>>, vector<8x1xf32>
      tpu.vector_store %arg7[%c0_29, %c0_30], %39 {strides = array<i32>} : memref<8x1xf32, #tpu.memory_space<vmem>>, vector<8x1xf32>,
      %cst_31 = arith.constant 0.000000e+00 : f32
      %41 = vector.broadcast %cst_31 : f32 to vector<8x1xf32>
      %c0_32 = arith.constant 0 : index
      %c0_33 = arith.constant 0 : index
      %42 = vector.load %arg8[%c0_32, %c0_33] : memref<8x1xf32, #tpu.memory_space<vmem>>, vector<8x1xf32>
      tpu.vector_store %arg8[%c0_32, %c0_33], %41 {strides = array<i32>} : memref<8x1xf32, #tpu.memory_space<vmem>>, vector<8x1xf32>,
      %cst_34 = arith.constant 0.000000e+00 : f32
      %43 = vector.broadcast %cst_34 : f32 to vector<8x16xf32>
      %c0_35 = arith.constant 0 : index
      %c0_36 = arith.constant 0 : index
      %44 = vector.load %arg9[%c0_35, %c0_36] : memref<8x16xf32, #tpu.memory_space<vmem>>, vector<8x16xf32>
      tpu.vector_store %arg9[%c0_35, %c0_36], %43 {strides = array<i32>} : memref<8x16xf32, #tpu.memory_space<vmem>>, vector<8x16xf32>,
    } else {
    }
    %c0 = arith.constant 0 : index
    %c0_1 = arith.constant 0 : index
    %c0_2 = arith.constant 0 : index
    %3 = vector.load %arg3[%c0, %c0_1, %c0_2] : memref<1x8x16xf32, #tpu.memory_space<vmem>>, vector<1x8x16xf32>
    %4 = vector.shape_cast %3 : vector<1x8x16xf32> to vector<8x16xf32>
    %cst = arith.constant 5.000000e-01 : f32
    %5 = vector.broadcast %cst : f32 to vector<8x16xf32>
    %6 = arith.mulf %4, %5 : vector<8x16xf32>
    %c0_3 = arith.constant 0 : index
    %c0_4 = arith.constant 0 : index
    %c0_5 = arith.constant 0 : index
    %7 = vector.load %arg4[%c0_3, %c0_4, %c0_5] : memref<1x8x16xf32, #tpu.memory_space<vmem>>, vector<1x8x16xf32>
    %8 = vector.shape_cast %7 : vector<1x8x16xf32> to vector<8x16xf32>
    %cst_6 = arith.constant 5.000000e-01 : f32
    %9 = vector.broadcast %cst_6 : f32 to vector<8x16xf32>
    %10 = arith.mulf %8, %9 : vector<8x16xf32>
    %c0_7 = arith.constant 0 : index
    %c0_8 = arith.constant 0 : index
    %c0_9 = arith.constant 0 : index
    %11 = vector.load %arg5[%c0_7, %c0_8, %c0_9] : memref<1x8x16xf32, #tpu.memory_space<vmem>>, vector<1x8x16xf32>
    %12 = vector.shape_cast %11 : vector<1x8x16xf32> to vector<8x16xf32>
    %cst_10 = arith.constant dense<0.000000e+00> : vector<8x8xf32>
    %13 = tpu.matmul %6, %10, %cst_10 {dimension_numbers = #tpu.dot_dimension_numbers<[1], [1], [0], [0], [0, 0, 1, 0], [], []>} : vector<8x16xf32>, vector<8x16xf32>, vector<8x8xf32> -> vector<8x8xf32>
    %c0_11 = arith.constant 0 : index
    %c0_12 = arith.constant 0 : index
    %14 = vector.load %arg7[%c0_11, %c0_12] : memref<8x1xf32, #tpu.memory_space<vmem>>, vector<8x1xf32>
    %cst_13 = arith.constant dense<0xFF800000> : vector<8xf32>
    %15 = vector.multi_reduction <maximumf>, %13, %cst_13 [1] : vector<8x8xf32> to vector<8xf32>
    %16 = vector.shape_cast %15 : vector<8xf32> to vector<8x1xf32>
    %17 = arith.maximumf %14, %16 : vector<8x1xf32>
    %18 = arith.subf %14, %17 : vector<8x1xf32>
    %19 = math.exp %18 : vector<8x1xf32>
    %20 = vector.broadcast %17 : vector<8x1xf32> to vector<8x8xf32>
    %21 = arith.subf %13, %20 : vector<8x8xf32>
    %22 = math.exp %21 : vector<8x8xf32>
    %c0_14 = arith.constant 0 : index
    %c0_15 = arith.constant 0 : index
    %23 = vector.load %arg8[%c0_14, %c0_15] : memref<8x1xf32, #tpu.memory_space<vmem>>, vector<8x1xf32>
    %24 = arith.mulf %19, %23 : vector<8x1xf32>
    %cst_16 = arith.constant dense<0.000000e+00> : vector<8xf32>
    %25 = vector.multi_reduction <add>, %22, %cst_16 [1] : vector<8x8xf32> to vector<8xf32>
    %26 = vector.shape_cast %25 : vector<8xf32> to vector<8x1xf32>
    %27 = arith.addf %24, %26 : vector<8x1xf32>
    %c0_17 = arith.constant 0 : index
    %c0_18 = arith.constant 0 : index
    %28 = vector.load %arg8[%c0_17, %c0_18] : memref<8x1xf32, #tpu.memory_space<vmem>>, vector<8x1xf32>
    tpu.vector_store %arg8[%c0_17, %c0_18], %27 {strides = array<i32>} : memref<8x1xf32, #tpu.memory_space<vmem>>, vector<8x1xf32>,
    %c0_19 = arith.constant 0 : index
    %c0_20 = arith.constant 0 : index
    %29 = vector.load %arg9[%c0_19, %c0_20] : memref<8x16xf32, #tpu.memory_space<vmem>>, vector<8x16xf32>
    %30 = vector.broadcast %19 : vector<8x1xf32> to vector<8x16xf32>
    %31 = arith.mulf %30, %29 : vector<8x16xf32>
    %cst_21 = arith.constant dense<0.000000e+00> : vector<8x16xf32>
    %32 = tpu.matmul %22, %12, %cst_21 {dimension_numbers = #tpu.dot_dimension_numbers<[1], [0], [0], [1], [0, 0, 1, 1], [], []>} : vector<8x8xf32>, vector<8x16xf32>, vector<8x16xf32> -> vector<8x16xf32>
    %33 = arith.addf %31, %32 : vector<8x16xf32>
    %c0_22 = arith.constant 0 : index
    %c0_23 = arith.constant 0 : index
    %34 = vector.load %arg9[%c0_22, %c0_23] : memref<8x16xf32, #tpu.memory_space<vmem>>, vector<8x16xf32>
    tpu.vector_store %arg9[%c0_22, %c0_23], %33 {strides = array<i32>} : memref<8x16xf32, #tpu.memory_space<vmem>>, vector<8x16xf32>,
    %c0_24 = arith.constant 0 : index
    %c0_25 = arith.constant 0 : index
    %35 = vector.load %arg7[%c0_24, %c0_25] : memref<8x1xf32, #tpu.memory_space<vmem>>, vector<8x1xf32>
    tpu.vector_store %arg7[%c0_24, %c0_25], %17 {strides = array<i32>} : memref<8x1xf32, #tpu.memory_space<vmem>>, vector<8x1xf32>,
    %c0_i32_26 = arith.constant 0 : i32
    %36 = arith.cmpi eq, %arg2, %c0_i32_26 : i32
    %37 = arith.extui %36 : i1 to i32
    %c0_i32_27 = arith.constant 0 : i32
    %38 = arith.cmpi ne, %37, %c0_i32_27 : i32
    scf.if %38 {
      %c0_28 = arith.constant 0 : index
      %c0_29 = arith.constant 0 : index
      %39 = vector.load %arg9[%c0_28, %c0_29] : memref<8x16xf32, #tpu.memory_space<vmem>>, vector<8x16xf32>
      %c0_30 = arith.constant 0 : index
      %c0_31 = arith.constant 0 : index
      %40 = vector.load %arg8[%c0_30, %c0_31] : memref<8x1xf32, #tpu.memory_space<vmem>>, vector<8x1xf32>
      %41 = vector.broadcast %40 : vector<8x1xf32> to vector<8x16xf32>
      %42 = arith.divf %39, %41 : vector<8x16xf32>
      %c0_32 = arith.constant 0 : index
      %c0_33 = arith.constant 0 : index
      %c0_34 = arith.constant 0 : index
      %43 = vector.load %arg6[%c0_32, %c0_33, %c0_34] : memref<1x8x16xf32, #tpu.memory_space<vmem>>, vector<1x8x16xf32>
      %44 = vector.shape_cast %43 : vector<1x8x16xf32> to vector<8x16xf32>
      %45 = vector.shape_cast %42 : vector<8x16xf32> to vector<1x8x16xf32>
      tpu.vector_store %arg6[%c0_32, %c0_33, %c0_34], %45 {strides = array<i32>} : memref<1x8x16xf32, #tpu.memory_space<vmem>>, vector<1x8x16xf32>,
    } else {
    }
    return
  }
  func.func @transform_0(%arg0: i32, %arg1: i32, %arg2: i32) -> (i32, i32, i32) {
    %c0_i32 = arith.constant 0 : i32
    %c0_i32_0 = arith.constant 0 : i32
    return %arg0, %arg1, %c0_i32 : i32, i32, i32
  }
  func.func @transform_1(%arg0: i32, %arg1: i32, %arg2: i32) -> (i32, i32, i32) {
    %c0_i32 = arith.constant 0 : i32
    %c0_i32_0 = arith.constant 0 : i32
    return %arg0, %arg2, %c0_i32 : i32, i32, i32
  }
  func.func @transform_2(%arg0: i32, %arg1: i32, %arg2: i32) -> (i32, i32, i32) {
    %c0_i32 = arith.constant 0 : i32
    %c0_i32_0 = arith.constant 0 : i32
    return %arg0, %arg2, %c0_i32 : i32, i32, i32
  }
  func.func @transform_3(%arg0: i32, %arg1: i32, %arg2: i32) -> (i32, i32, i32) {
    %c0_i32 = arith.constant 0 : i32
    %c0_i32_0 = arith.constant 0 : i32
    return %arg0, %arg1, %c0_i32 : i32, i32, i32
  }
}

</mosaic_0001>

<llo_original>
// kernel: tpu_custom_call.1
$region0: #{tpu_custom_call.1}
  #allocation0 [shape = 'u32[]', space=smem, size = 0x4, offset = 0x4, fixed_abs, tag = 'smem constant byte address 0x4 - core index']
  #allocation1 [shape = 'u32[144,128]{1,0:T(1,128)}', space=vmem, size = 0x12000, scoped, tag = 'internal scratch']
  #allocation2 [shape = 'f32[8,1]{1,0:T(8,128)}', space=vmem, size = 0x1000, scoped, tag = 'scratch operand']
  #allocation3 [shape = 'f32[8,1]{1,0:T(8,128)}', space=vmem, size = 0x1000, scoped, tag = 'scratch operand']
  #allocation4 [shape = 'f32[8,16]{1,0:T(8,128)}', space=vmem, size = 0x1000, scoped, tag = 'scratch operand']
  %s0 = inlined_call_operand.hbm [shape: f32[8,8,16], index: 0, kind: input, shape index: {}]
  %s1 = inlined_call_operand.hbm [shape: f32[8,8,16], index: 1, kind: input, shape index: {}]
  %s2 = inlined_call_operand.hbm [shape: f32[8,8,16], index: 2, kind: input, shape index: {}]
  %s3 = inlined_call_operand.hbm [shape: f32[8,8,16], index: 3, kind: output, shape index: {}]
  %s4 = sld [smem:[#allocation0]]
  $region65: #{tpu_custom_call.1} parent=0
    _
  %s6 = ssub.s32 1, %s4
  %s7 = scalar_select 0, %s6, %s4
  $region1: #{tpu_custom_call.1} parent=0
    #allocation5 [shape = 'u8[8192]{0}', space=vmem, size = 0x2000, scoped, tag = 'input window, operand 0']
    #allocation6 [shape = 's32[2]{0}', space=sflag, size = 0x8, scoped, tag = 'scoped memory for tpu_custom_call.1']
    #allocation7 [shape = 's32[2]{0}', space=sflag, size = 0x8, scoped, tag = 'scoped memory for tpu_custom_call.1']
    #allocation8 [shape = 'u8[8192]{0}', space=vmem, size = 0x2000, scoped, tag = 'input window, operand 1']
    #allocation9 [shape = 's32[2]{0}', space=sflag, size = 0x8, scoped, tag = 'scoped memory for tpu_custom_call.1']
    #allocation10 [shape = 'u8[8192]{0}', space=vmem, size = 0x2000, scoped, tag = 'input window, operand 2']
    #allocation11 [shape = 'u8[8192]{0}', space=vmem, size = 0x2000, scoped, tag = 'output window, operand 0']
    %8 = vsyncpa [#allocation6], 0
    %s9 = scalar_lea.sflag [#allocation6], 1
    %10 = vsyncpa %s9, 0
    %11 = vsyncpa [#allocation9], 0
    %s12 = scalar_lea.sflag [#allocation9], 1
    %13 = vsyncpa %s12, 0
    %14 = vsyncpa [#allocation7], 0
    %s15 = scalar_lea.sflag [#allocation7], 1
    %16 = vsyncpa %s15, 0
    loop: start=0, step=1, limit=10
    $region2: #{tpu_custom_call.1} parent=1 // loop_pre_header
      _
    $region3: #{tpu_custom_call.1} parent=1 // loop_header
      %s18 = sphi 0, %s22
      %p19 = scmp.ge.s32.totalorder %s18, 10
      %s25 = sphi 0, %s44
      %s26 = sphi 0, %s40
      %s27 = sphi 0, %s36
      %s28 = sphi 0, %s25
      %s29 = sphi 0, %s26
      %s30 = sphi 0, %s27
      %s31 = sphi 0, %s28
      %s32 = sphi 0, %s29
      %s33 = sphi 0, %s30
      %s49 = sphi 0, %s51
      %s52 = sphi 0, %s49
      %s53 = sphi 0, %s52
      %s69 = sphi 0, %s53
      %s77 = sphi 0, %s79
      %s80 = sphi 0, %s77
      %s81 = sphi 0, %s80
      %s97 = sphi 0, %s81
      %s105 = sphi 0, %s107
      %s108 = sphi 0, %s105
      %s109 = sphi 0, %s108
      %s125 = sphi 0, %s109
      %s133 = sphi 0, %s135
      %s136 = sphi 0, %s133
      %s137 = sphi 0, %s136
      %s153 = sphi 0, %s137
    $region4: #{tpu_custom_call.1} parent=1 // loop_header_branch
      %21 = sbr.rel (%p19) target = $region8
    $region5: #{tpu_custom_call.1} parent=1 // loop_body
      %s23 = ssub.s32 %s18, 1
      %s24 = ssub.s32 %s18, 2
      %s34 = sadd.s32 1, %s27
      %p35 = scmp.ge.s32.totalorder %s34, 1
      %s36 = scalar_select %p35, 0, %s34
      %s37 = sadd.s32 1, %s26
      %s38 = scalar_select %p35, %s37, %s26
      %p39 = scmp.ge.s32.totalorder %s38, 1
      %s40 = scalar_select %p39, 0, %s38
      %s41 = sadd.s32 1, %s25
      %s42 = scalar_select %p39, %s41, %s25
      %p43 = scmp.ge.s32.totalorder %s42, 8
      %s44 = scalar_select %p43, 0, %s42
      %s45 = ssub.s32 %s25, %s44
      %s46 = ssub.s32 %s26, %s40
      %s47 = sor.u32 %s45, %s46
      %p48 = scmp.eq.s32.totalorder %s47, 0
      %s50 = sadd.s32 %s49, 1
      %s51 = scalar_select %p48, %s49, %s50
      %p54 = pneg %p48
      %p55 = scmp.eq.s32.totalorder %s18, 7
      %p56 = por %p54, %p55
      %p57 = scmp.ne.s32.totalorder %s49, %s52
      %p58 = scmp.eq.s32.totalorder %s18, 0
      %p59 = por %p57, %p58
      %p60 = scmp.ne.s32.totalorder %s49, %s52
      %p61 = scmp.eq.s32.totalorder %s23, 7
      %p62 = por %p60, %p61
      %p63 = scmp.ne.s32.totalorder %s52, %s53
      %p64 = scmp.eq.s32.totalorder %s23, 0
      %p65 = por %p63, %p64
      %p66 = scmp.ne.s32.totalorder %s52, %s53
      %p67 = scmp.eq.s32.totalorder %s24, 7
      %p68 = por %p66, %p67
      %p70 = scmp.ne.s32.totalorder %s53, %s69
      %p71 = scmp.eq.s32.totalorder %s24, 0
      %p72 = por %p70, %p71
      %s73 = ssub.s32 %s25, %s44
      %s74 = ssub.s32 %s27, %s36
      %s75 = sor.u32 %s73, %s74
      %p76 = scmp.eq.s32.totalorder %s75, 0
      %s78 = sadd.s32 %s77, 1
      %s79 = scalar_select %p76, %s77, %s78
      %p82 = pneg %p76
      %p83 = scmp.eq.s32.totalorder %s18, 7
      %p84 = por %p82, %p83
      %p85 = scmp.ne.s32.totalorder %s77, %s80
      %p86 = scmp.eq.s32.totalorder %s18, 0
      %p87 = por %p85, %p86
      %p88 = scmp.ne.s32.totalorder %s77, %s80
      %p89 = scmp.eq.s32.totalorder %s23, 7
      %p90 = por %p88, %p89
      %p91 = scmp.ne.s32.totalorder %s80, %s81
      %p92 = scmp.eq.s32.totalorder %s23, 0
      %p93 = por %p91, %p92
      %p94 = scmp.ne.s32.totalorder %s80, %s81
      %p95 = scmp.eq.s32.totalorder %s24, 7
      %p96 = por %p94, %p95
      %p98 = scmp.ne.s32.totalorder %s81, %s97
      %p99 = scmp.eq.s32.totalorder %s24, 0
      %p100 = por %p98, %p99
      %s101 = ssub.s32 %s25, %s44
      %s102 = ssub.s32 %s27, %s36
      %s103 = sor.u32 %s101, %s102
      %p104 = scmp.eq.s32.totalorder %s103, 0
      %s106 = sadd.s32 %s105, 1
      %s107 = scalar_select %p104, %s105, %s106
      %p110 = pneg %p104
      %p111 = scmp.eq.s32.totalorder %s18, 7
      %p112 = por %p110, %p111
      %p113 = scmp.ne.s32.totalorder %s105, %s108
      %p114 = scmp.eq.s32.totalorder %s18, 0
      %p115 = por %p113, %p114
      %p116 = scmp.ne.s32.totalorder %s105, %s108
      %p117 = scmp.eq.s32.totalorder %s23, 7
      %p118 = por %p116, %p117
      %p119 = scmp.ne.s32.totalorder %s108, %s109
      %p120 = scmp.eq.s32.totalorder %s23, 0
      %p121 = por %p119, %p120
      %p122 = scmp.ne.s32.totalorder %s108, %s109
      %p123 = scmp.eq.s32.totalorder %s24, 7
      %p124 = por %p122, %p123
      %p126 = scmp.ne.s32.totalorder %s109, %s125
      %p127 = scmp.eq.s32.totalorder %s24, 0
      %p128 = por %p126, %p127
      %s129 = ssub.s32 %s25, %s44
      %s130 = ssub.s32 %s26, %s40
      %s131 = sor.u32 %s129, %s130
      %p132 = scmp.eq.s32.totalorder %s131, 0
      %s134 = sadd.s32 %s133, 1
      %s135 = scalar_select %p132, %s133, %s134
      %p138 = pneg %p132
      %p139 = scmp.eq.s32.totalorder %s18, 7
      %p140 = por %p138, %p139
      %p141 = scmp.ne.s32.totalorder %s133, %s136
      %p142 = scmp.eq.s32.totalorder %s18, 0
      %p143 = por %p141, %p142
      %p144 = scmp.ne.s32.totalorder %s133, %s136
      %p145 = scmp.eq.s32.totalorder %s23, 7
      %p146 = por %p144, %p145
      %p147 = scmp.ne.s32.totalorder %s136, %s137
      %p148 = scmp.eq.s32.totalorder %s23, 0
      %p149 = por %p147, %p148
      %p150 = scmp.ne.s32.totalorder %s136, %s137
      %p151 = scmp.eq.s32.totalorder %s24, 7
      %p152 = por %p150, %p151
      %p154 = scmp.ne.s32.totalorder %s137, %s153
      %p155 = scmp.eq.s32.totalorder %s24, 0
      %p156 = por %p154, %p155
      %p157 = scmp.le.s32.totalorder 1, %s18
      %p158 = scmp.lt.s32.totalorder %s18, 9
      %p159 = pnand %p157, %p158
      %p160 = pneg %p159
      // Predicated region
      $region9: #{tpu_custom_call.1} parent=5 // pred_check
        _
      $region10: #{tpu_custom_call.1} parent=5 // pred_check_branch
        %162 = sbr.rel (%p159) target = $region12
      $region11: #{tpu_custom_call.1} parent=5 // pred_region
        %s163 = ssub.s32 %s18, 1
      $region12: #{tpu_custom_call.1} parent=5 // pred_fallthru
        _
      %p164 = scmp.lt.s32.totalorder %s18, 8
      // Predicated region
      $region13: #{tpu_custom_call.1} parent=5 // pred_check
        %p165 = pneg %p164
      $region14: #{tpu_custom_call.1} parent=5 // pred_check_branch
        %167 = sbr.rel (%p165) target = $region16
      $region15: #{tpu_custom_call.1} parent=5 // pred_region
        // Predicated region
        $region17: #{tpu_custom_call.1} parent=15 // pred_check
          %p168 = pneg %p59
        $region18: #{tpu_custom_call.1} parent=15 // pred_check_branch
          %170 = sbr.rel (%p168) target = $region20
        $region19: #{tpu_custom_call.1} parent=15 // pred_region
          %s171 = sand.u32 %s49, 1
          %s172 = scalar_lea.sflag [#allocation6], %s171
          %s173 = sand.u32 %s49, 1
          %s174 = smul.addr %s173, 8
          %s175 = scalar_lea.vmem [#allocation5], %s174
          %s177 = ssub.s32 128, 128
          %178 = vsyncadd %s172, %s177
          %s179 = sadd.s32 %s26, %s25
          %s180 = smul.addr %s179, 128
          %s181 = scalar_lea.hbm %s0, %s180
          %s183 = sshll.u32 %s175, 4
          %s184 = int_to_ptr.vmem [resolvable:$true] %s183
          %186 = dma.hbm_to_vmem [thread:$0]  %s181, 128, %s184, %s172
        $region20: #{tpu_custom_call.1} parent=15 // pred_fallthru
          _
        // Predicated region
        $region21: #{tpu_custom_call.1} parent=15 // pred_check
          %p187 = pneg %p87
        $region22: #{tpu_custom_call.1} parent=15 // pred_check_branch
          %189 = sbr.rel (%p187) target = $region24
        $region23: #{tpu_custom_call.1} parent=15 // pred_region
          %s190 = sand.u32 %s18, 1
          %s191 = scalar_lea.sflag [#allocation9], %s190
          %s192 = sand.u32 %s77, 1
          %s193 = smul.addr %s192, 8
          %s194 = scalar_lea.vmem [#allocation8], %s193
          %s196 = ssub.s32 128, 128
          %197 = vsyncadd %s191, %s196
          %s198 = sadd.s32 %s27, %s25
          %s199 = smul.addr %s198, 128
          %s200 = scalar_lea.hbm %s1, %s199
          %s202 = sshll.u32 %s194, 4
          %s203 = int_to_ptr.vmem [resolvable:$true] %s202
          %205 = dma.hbm_to_vmem [thread:$0]  %s200, 128, %s203, %s191
        $region24: #{tpu_custom_call.1} parent=15 // pred_fallthru
          _
        // Predicated region
        $region25: #{tpu_custom_call.1} parent=15 // pred_check
          %p206 = pneg %p115
        $region26: #{tpu_custom_call.1} parent=15 // pred_check_branch
          %208 = sbr.rel (%p206) target = $region28
        $region27: #{tpu_custom_call.1} parent=15 // pred_region
          %s209 = sand.u32 %s18, 1
          %s210 = scalar_lea.sflag [#allocation9], %s209
          %s211 = sand.u32 %s105, 1
          %s212 = smul.addr %s211, 8
          %s213 = scalar_lea.vmem [#allocation10], %s212
          %s215 = ssub.s32 128, 128
          %216 = vsyncadd %s210, %s215
          %s217 = sadd.s32 %s27, %s25
          %s218 = smul.addr %s217, 128
          %s219 = scalar_lea.hbm %s2, %s218
          %s221 = sshll.u32 %s213, 4
          %s222 = int_to_ptr.vmem [resolvable:$true] %s221
          %224 = dma.hbm_to_vmem [thread:$0]  %s219, 128, %s222, %s210
        $region28: #{tpu_custom_call.1} parent=15 // pred_fallthru
          _
      $region16: #{tpu_custom_call.1} parent=5 // pred_fallthru
        _
      %p225 = scmp.le.s32.totalorder 1, %s18
      %p226 = scmp.lt.s32.totalorder %s18, 9
      %p227 = pnand %p225, %p226
      %p228 = pneg %p227
      // Predicated region
      $region29: #{tpu_custom_call.1} parent=5 // pred_check
        _
      $region30: #{tpu_custom_call.1} parent=5 // pred_check_branch
        %230 = sbr.rel (%p227) target = $region32
      $region31: #{tpu_custom_call.1} parent=5 // pred_region
        %s231 = ssub.s32 %s18, 1
        %s232 = sand.u32 %s52, 1
        %s233 = scalar_lea.sflag [#allocation6], %s232
        %s234 = sand.u32 %s52, 1
        %s235 = smul.addr %s234, 8
        %s236 = scalar_lea.vmem [#allocation5], %s235
        // Predicated region
        $region33: #{tpu_custom_call.1} parent=31 // pred_check
          %p237 = pneg %p65
        $region34: #{tpu_custom_call.1} parent=31 // pred_check_branch
          %239 = sbr.rel (%p237) target = $region36
        $region35: #{tpu_custom_call.1} parent=31 // pred_region
          %240 = dma.done %s233, 128
        $region36: #{tpu_custom_call.1} parent=31 // pred_fallthru
          _
        %s241 = sand.u32 %s23, 1
        %s242 = scalar_lea.sflag [#allocation9], %s241
        %s243 = sand.u32 %s80, 1
        %s244 = smul.addr %s243, 8
        %s245 = scalar_lea.vmem [#allocation8], %s244
        // Predicated region
        $region37: #{tpu_custom_call.1} parent=31 // pred_check
          %p246 = pneg %p93
        $region38: #{tpu_custom_call.1} parent=31 // pred_check_branch
          %248 = sbr.rel (%p246) target = $region40
        $region39: #{tpu_custom_call.1} parent=31 // pred_region
          %249 = dma.done %s242, 128
        $region40: #{tpu_custom_call.1} parent=31 // pred_fallthru
          _
        %s250 = sand.u32 %s23, 1
        %s251 = scalar_lea.sflag [#allocation9], %s250
        %s252 = sand.u32 %s108, 1
        %s253 = smul.addr %s252, 8
        %s254 = scalar_lea.vmem [#allocation10], %s253
        // Predicated region
        $region41: #{tpu_custom_call.1} parent=31 // pred_check
          %p255 = pneg %p121
        $region42: #{tpu_custom_call.1} parent=31 // pred_check_branch
          %257 = sbr.rel (%p255) target = $region44
        $region43: #{tpu_custom_call.1} parent=31 // pred_region
          %258 = dma.done %s251, 128
        $region44: #{tpu_custom_call.1} parent=31 // pred_fallthru
          _
        %s259 = sand.u32 %s52, 1
        %s260 = scalar_lea.sflag [#allocation6], %s259
        %s261 = sand.u32 %s52, 1
        %s262 = smul.addr %s261, 8
        %s263 = scalar_lea.vmem [#allocation5], %s262
        %p264 = pneg %p65
        %p265 = pneg %p62
        %s266 = sand.u32 %s23, 1
        %s267 = scalar_lea.sflag [#allocation9], %s266
        %s268 = sand.u32 %s80, 1
        %s269 = smul.addr %s268, 8
        %s270 = scalar_lea.vmem [#allocation8], %s269
        %p271 = pneg %p93
        %p272 = pneg %p90
        %s273 = sand.u32 %s23, 1
        %s274 = scalar_lea.sflag [#allocation9], %s273
        %s275 = sand.u32 %s108, 1
        %s276 = smul.addr %s275, 8
        %s277 = scalar_lea.vmem [#allocation10], %s276
        %p278 = pneg %p121
        %p279 = pneg %p118
        %p280 = pneg %p149
        %p281 = pneg %p146
        %s282 = sand.u32 %s136, 1
        %s283 = scalar_lea.sflag [#allocation7], %s282
        %s284 = sand.u32 %s136, 1
        %s285 = smul.addr %s284, 8
        %s286 = scalar_lea.vmem [#allocation11], %s285
        %p287 = scmp.eq.s32.totalorder %s30, 0
        // Predicated region
        $region45: #{tpu_custom_call.1} parent=31 // pred_check
          %p288 = pneg %p287
        $region46: #{tpu_custom_call.1} parent=31 // pred_check_branch
          %290 = sbr.rel (%p288) target = $region48
        $region47: #{tpu_custom_call.1} parent=31 // pred_region
          %vm291 = vcmask 7168
          %292 = vst.msk [vmem:[#allocation2] sm:$0xff] %vm291, -inf
          %293 = vst.msk [vmem:[#allocation3] sm:$0xff] %vm291, 0.0
          %vm294 = vcmask 130048
          %295 = vst.msk [vmem:[#allocation4] sm:$0xff] %vm294, 0.0
        $region48: #{tpu_custom_call.1} parent=31 // pred_fallthru
          _
        %v296 = vld [vmem:[%s236] sm:$0xff]
        %v297 = vmul.f32 %v296, 0.5
        %v298 = vld [vmem:[%s245] sm:$0xff]
        %v299 = vmul.f32 %v298, 0.5
        %v300 = vld [vmem:[%s254] sm:$0xff]
        %vm301 = vcmask 130048
        %v303 = vsel %vm301, %v297, 0
        %v306 = vsel %vm301, %v299, 0
        %308 = vmatprep.subr.mxu0 0.0
        %309 = vmatpush1.xpose.msra.mxu0 %v306
        %310 = vmatprep.subr.mxu0 0.0
        %311 = vmatpush1.xpose.msra.mxu0 0.0
        %312 = vmatprep.subr.mxu0 0.0
        %313 = vmatpush1.xpose.msra.mxu0 0.0
        %314 = vmatprep.subr.mxu0 0.0
        %315 = vmatpush1.xpose.msra.mxu0 0.0
        %316 = vmatprep.subr.mxu0 0.0
        %317 = vmatpush1.xpose.msra.mxu0 0.0
        %318 = vmatprep.subr.mxu0 0.0
        %319 = vmatpush1.xpose.msra.mxu0 0.0
        %320 = vmatprep.subr.mxu0 0.0
        %321 = vmatpush1.xpose.msra.mxu0 0.0
        %322 = vmatprep.subr.mxu0 0.0
        %323 = vmatpush1.xpose.msra.mxu0 0.0
        %324 = vmatprep.subr.mxu0 0.0
        %325 = vmatpush1.xpose.msra.mxu0 0.0
        %326 = vmatprep.subr.mxu0 0.0
        %327 = vmatpush1.xpose.msra.mxu0 0.0
        %328 = vmatprep.subr.mxu0 0.0
        %329 = vmatpush1.xpose.msra.mxu0 0.0
        %330 = vmatprep.subr.mxu0 0.0
        %331 = vmatpush1.xpose.msra.mxu0 0.0
        %332 = vmatprep.subr.mxu0 0.0
        %333 = vmatpush1.xpose.msra.mxu0 0.0
        %334 = vmatprep.subr.mxu0 0.0
        %335 = vmatpush1.xpose.msra.mxu0 0.0
        %336 = vmatprep.subr.mxu0 0.0
        %337 = vmatpush1.xpose.msra.mxu0 0.0
        %338 = vmatprep.subr.mxu0 0.0
        %339 = vmatpush1.xpose.msra.mxu0 0.0
        %340 = vmatprep.subr.mxu0 0.0
        %341 = vmatpush1.xpose.msra.mxu0 0.0
        %342 = vmatprep.subr.mxu0 0.0
        %343 = vmatpush1.xpose.msra.mxu0 0.0
        %344 = vmatprep.subr.mxu0 0.0
        %345 = vmatpush1.xpose.msra.mxu0 0.0
        %346 = vmatprep.subr.mxu0 0.0
        %347 = vmatpush1.xpose.msra.mxu0 0.0
        %348 = vmatprep.subr.mxu0 0.0
        %349 = vmatpush1.xpose.msra.mxu0 0.0
        %350 = vmatprep.subr.mxu0 0.0
        %351 = vmatpush1.xpose.msra.mxu0 0.0
        %352 = vmatprep.subr.mxu0 0.0
        %353 = vmatpush1.xpose.msra.mxu0 0.0
        %354 = vmatprep.subr.mxu0 0.0
        %355 = vmatpush1.xpose.msra.mxu0 0.0
        %356 = vmatprep.subr.mxu0 0.0
        %357 = vmatpush1.xpose.msra.mxu0 0.0
        %358 = vmatprep.subr.mxu0 0.0
        %359 = vmatpush1.xpose.msra.mxu0 0.0
        %360 = vmatprep.subr.mxu0 0.0
        %361 = vmatpush1.xpose.msra.mxu0 0.0
        %362 = vmatprep.subr.mxu0 0.0
        %363 = vmatpush1.xpose.msra.mxu0 0.0
        %364 = vmatprep.subr.mxu0 0.0
        %365 = vmatpush1.xpose.msra.mxu0 0.0
        %366 = vmatprep.subr.mxu0 0.0
        %367 = vmatpush1.xpose.msra.mxu0 0.0
        %368 = vmatprep.subr.mxu0 0.0
        %369 = vmatpush1.xpose.msra.mxu0 0.0
        %370 = vmatprep.subr.mxu0 0.0
        %371 = vmatpush1.xpose.msra.mxu0 0.0
        %372 = vmatprep.mubr.f32.mxu0 0.0
        %373 = vmatmul.mubr.f32.gmra.mrb[0].mxu0 %v303
        %v374 = vpop.f32.mrb[0].mxu0
        %v375 = vadd.f32 0.0, %v374
        %v376 = vpop.f32.mrb[0].mxu0
        %377 = vdwg.mxu0
        %v378 = vld [vmem:[#allocation2] sm:$0xff]
        %vm379 = vcmask 64512
        %v380 = vsel %vm379, %v375, -inf
        %381 = vmax.xlane.f32.xlu0 %v380
        %v382 = vpop.xlane.xlu0 %381
        %v383 = vmax.f32 %v378, %v382
        %v384 = vsub.f32 %v378, %v383
        %v385 = vmul.f32 %v384, 1.442695
        %v386 = vpow.pop %v385
        %388 = vset.pattern.permute.xlu0 0
        %389 = vperm.xlu0 %388, %v383
        %v390 = vpop.permute.xlu0 %389
        %v392 = vsub.f32 %v375, %v390
        %v393 = vmul.f32 %v392, 1.442695
        %v394 = vpow.pop %v393
        %v395 = vld [vmem:[#allocation3] sm:$0xff]
        %v396 = vmul.f32 %v386, %v395
        %v397 = vsel %vm379, %v394, 0.0
        %398 = vadd.xlane.f32.xlu0 %v397
        %v399 = vpop.xlane.xlu0 %398
        %v400 = vadd.f32 %v396, %v399
        %vm401 = vcmask 7168
        %402 = vst.msk [vmem:[#allocation3] sm:$0xff] %vm401, %v400
        %v403 = vld [vmem:[#allocation4] sm:$0xff]
        %405 = vset.pattern.permute.xlu0 0
        %406 = vperm.xlu0 %405, %v386
        %v407 = vpop.permute.xlu0 %406
        %v409 = vmul.f32 %v407, %v403
        %v411 = vsel %vm379, %v394, 0
        %413 = vmatprep.subr.mxu0 0.0
        %414 = vmatpush1.msra.mxu0 %v300
        %415 = vmatprep.subr.mxu0 0.0
        %416 = vmatpush1.msra.mxu0 0.0
        %417 = vmatprep.subr.mxu0 0.0
        %418 = vmatpush1.msra.mxu0 0.0
        %419 = vmatprep.subr.mxu0 0.0
        %420 = vmatpush1.msra.mxu0 0.0
        %421 = vmatprep.subr.mxu0 0.0
        %422 = vmatpush1.msra.mxu0 0.0
        %423 = vmatprep.subr.mxu0 0.0
        %424 = vmatpush1.msra.mxu0 0.0
        %425 = vmatprep.subr.mxu0 0.0
        %426 = vmatpush1.msra.mxu0 0.0
        %427 = vmatprep.subr.mxu0 0.0
        %428 = vmatpush1.msra.mxu0 0.0
        %429 = vmatprep.subr.mxu0 0.0
        %430 = vmatpush1.msra.mxu0 0.0
        %431 = vmatprep.subr.mxu0 0.0
        %432 = vmatpush1.msra.mxu0 0.0
        %433 = vmatprep.subr.mxu0 0.0
        %434 = vmatpush1.msra.mxu0 0.0
        %435 = vmatprep.subr.mxu0 0.0
        %436 = vmatpush1.msra.mxu0 0.0
        %437 = vmatprep.subr.mxu0 0.0
        %438 = vmatpush1.msra.mxu0 0.0
        %439 = vmatprep.subr.mxu0 0.0
        %440 = vmatpush1.msra.mxu0 0.0
        %441 = vmatprep.subr.mxu0 0.0
        %442 = vmatpush1.msra.mxu0 0.0
        %443 = vmatprep.subr.mxu0 0.0
        %444 = vmatpush1.msra.mxu0 0.0
        %445 = vmatprep.subr.mxu0 0.0
        %446 = vmatpush1.msra.mxu0 0.0
        %447 = vmatprep.subr.mxu0 0.0
        %448 = vmatpush1.msra.mxu0 0.0
        %449 = vmatprep.subr.mxu0 0.0
        %450 = vmatpush1.msra.mxu0 0.0
        %451 = vmatprep.subr.mxu0 0.0
        %452 = vmatpush1.msra.mxu0 0.0
        %453 = vmatprep.subr.mxu0 0.0
        %454 = vmatpush1.msra.mxu0 0.0
        %455 = vmatprep.subr.mxu0 0.0
        %456 = vmatpush1.msra.mxu0 0.0
        %457 = vmatprep.subr.mxu0 0.0
        %458 = vmatpush1.msra.mxu0 0.0
        %459 = vmatprep.subr.mxu0 0.0
        %460 = vmatpush1.msra.mxu0 0.0
        %461 = vmatprep.subr.mxu0 0.0
        %462 = vmatpush1.msra.mxu0 0.0
        %463 = vmatprep.subr.mxu0 0.0
        %464 = vmatpush1.msra.mxu0 0.0
        %465 = vmatprep.subr.mxu0 0.0
        %466 = vmatpush1.msra.mxu0 0.0
        %467 = vmatprep.subr.mxu0 0.0
        %468 = vmatpush1.msra.mxu0 0.0
        %469 = vmatprep.subr.mxu0 0.0
        %470 = vmatpush1.msra.mxu0 0.0
        %471 = vmatprep.subr.mxu0 0.0
        %472 = vmatpush1.msra.mxu0 0.0
        %473 = vmatprep.subr.mxu0 0.0
        %474 = vmatpush1.msra.mxu0 0.0
        %475 = vmatprep.subr.mxu0 0.0
        %476 = vmatpush1.msra.mxu0 0.0
        %477 = vmatprep.mubr.f32.mxu0 0.0
        %478 = vmatmul.mubr.f32.gmra.mrb[0].mxu0 %v411
        %v479 = vpop.f32.mrb[0].mxu0
        %v480 = vadd.f32 0.0, %v479
        %v481 = vpop.f32.mrb[0].mxu0
        %482 = vdwg.mxu0
        %v483 = vadd.f32 %v409, %v480
        %484 = vst.msk [vmem:[#allocation4] sm:$0xff] %vm301, %v483
        %485 = vst.msk [vmem:[#allocation2] sm:$0xff] %vm401, %v383
        // Predicated region
        $region49: #{tpu_custom_call.1} parent=31 // pred_check
          %p486 = pneg %p287
        $region50: #{tpu_custom_call.1} parent=31 // pred_check_branch
          %488 = sbr.rel (%p486) target = $region52
        $region51: #{tpu_custom_call.1} parent=31 // pred_region
          %v489 = vld [vmem:[#allocation4] sm:$0xff]
          %v490 = vld [vmem:[#allocation3] sm:$0xff]
          %492 = vset.pattern.permute.xlu0 0
          %493 = vperm.xlu0 %492, %v490
          %v494 = vpop.permute.xlu0 %493
          %v496 = vrcp.pop %v494
          %v497 = vmul.f32 %v489, %v496
          %498 = vst.msk [vmem:[%s286] sm:$0xff] %vm301, %v497
        $region52: #{tpu_custom_call.1} parent=31 // pred_fallthru
          _
        %s499 = sand.u32 %s136, 1
        %s500 = scalar_lea.sflag [#allocation7], %s499
        %s501 = sand.u32 %s136, 1
        %s502 = smul.addr %s501, 8
        %s503 = scalar_lea.vmem [#allocation11], %s502
        // Predicated region
        $region53: #{tpu_custom_call.1} parent=31 // pred_check
          %p504 = pneg %p146
        $region54: #{tpu_custom_call.1} parent=31 // pred_check_branch
          %506 = sbr.rel (%p504) target = $region56
        $region55: #{tpu_custom_call.1} parent=31 // pred_region
          %s508 = ssub.s32 128, 128
          %509 = vsyncadd %s500, %s508
          %s510 = sadd.s32 %s29, %s28
          %s511 = smul.addr %s510, 128
          %s512 = scalar_lea.hbm %s3, %s511
          %s514 = sshll.u32 %s503, 4
          %s515 = int_to_ptr.vmem [resolvable:$true] %s514
          %517 = dma.vmem_to_hbm [thread:$0]  %s515, 128, %s512, %s500
        $region56: #{tpu_custom_call.1} parent=31 // pred_fallthru
          _
      $region32: #{tpu_custom_call.1} parent=5 // pred_fallthru
        _
      %p518 = scmp.le.s32.totalorder 2, %s18
      // Predicated region
      $region57: #{tpu_custom_call.1} parent=5 // pred_check
        %p519 = pneg %p518
      $region58: #{tpu_custom_call.1} parent=5 // pred_check_branch
        %521 = sbr.rel (%p519) target = $region60
      $region59: #{tpu_custom_call.1} parent=5 // pred_region
        %s522 = ssub.s32 %s18, 2
        // Predicated region
        $region61: #{tpu_custom_call.1} parent=59 // pred_check
          %p523 = pneg %p152
        $region62: #{tpu_custom_call.1} parent=59 // pred_check_branch
          %525 = sbr.rel (%p523) target = $region64
        $region63: #{tpu_custom_call.1} parent=59 // pred_region
          %s526 = sand.u32 %s137, 1
          %s527 = scalar_lea.sflag [#allocation7], %s526
          %s528 = sand.u32 %s137, 1
          %s529 = smul.addr %s528, 8
          %s530 = scalar_lea.vmem [#allocation11], %s529
          %531 = dma.done %s527, 128
        $region64: #{tpu_custom_call.1} parent=59 // pred_fallthru
          _
      $region60: #{tpu_custom_call.1} parent=5 // pred_fallthru
        _
    $region6: #{tpu_custom_call.1} parent=1 // loop_footer
      %s22 = sadd.s32 1, %s18
    $region7: #{tpu_custom_call.1} parent=1 // loop_footer_branch
      %17 = sbr.rel target = $region3
    $region8: #{tpu_custom_call.1} parent=1 // loop_exit
      _
    %532 = vsyncpa [#allocation6], 1
    %s533 = scalar_lea.sflag [#allocation6], 1
    %534 = vsyncpa %s533, 1
    %535 = vsyncpa [#allocation9], 1
    %s536 = scalar_lea.sflag [#allocation9], 1
    %537 = vsyncpa %s536, 1
    %538 = vsyncpa [#allocation7], 1
    %s539 = scalar_lea.sflag [#allocation7], 1
    %540 = vsyncpa %s539, 1

</llo_original>
